<compile_context>
chip_gen: v7x
topology: tpu7x:2x2x1
jax: 0.10.0
libtpu: 0.0.40
codegen_flags: <defaults>
</compile_context>

<pallas_src>
import jax
import jax.numpy as jnp
from jax import lax
from jax.experimental import pallas as pl
from jax.experimental.pallas import tpu as pltpu

EPS = 1e-5
PAD = 4     # max dilation / max padding; input is pre-padded by 4 on each side
NB = 4      # number of dilation branches (d = 1..4)
NTAP = 9    # 3x3 taps per branch


def _dilation_kernel(xcol_ref, wf_ref, bsc_ref, bsh_ref, skw_ref, ssc_ref,
                     ssh_ref, out_ref):
    """Matmul-only fused Dilation block for one group of G images.

    xcol_ref : (1, NB, Kp, G*HW) bf16  per-branch im2col patches (rows = tap*C + cin)
    wf_ref   : (NB, C, Kp)       bf16  fused depthwise*pointwise weights per branch
    bsc_ref  : (NB, C, 1)        f32   branch BN scales
    bsh_ref  : (NB, C, 1)        f32   branch BN shifts
    skw_ref  : (NB, C, C)        bf16  skip 1x1 weight, split per branch
    ssc_ref  : (C, 1)            f32   skip BN scale
    ssh_ref  : (C, 1)            f32   folded skip bias + skip BN shift
    out_ref  : (1, C, G*HW)      f32
    """
    acc = None
    for b in range(NB):                                   # unrolled at trace time
        # Branch b: fused depthwise(3x3, dilation b+1) + pointwise(1x1) on the MXU.
        yb = jnp.dot(wf_ref[b], xcol_ref[0, b],
                     preferred_element_type=jnp.float32)           # (C, G*HW)
        yb = jnp.maximum(yb * bsc_ref[b] + bsh_ref[b], 0.0)        # BN + ReLU (f32)
        # Skip 1x1 contribution of this branch; sum over branches == concat + 1x1.
        zb = jnp.dot(skw_ref[b], yb.astype(jnp.bfloat16),
                     preferred_element_type=jnp.float32)           # (C, G*HW)
        acc = zb if acc is None else acc + zb
    out_ref[0] = jnp.maximum(acc * ssc_ref[...] + ssh_ref[...], 0.0)


def _group_size(n):
    """Images per grid step: whole batch when tiny, else >=2 equal groups (v7x TCs)."""
    if n <= 2:
        return n
    for g in range(n // 2, 0, -1):
        if n % g == 0:
            return g
    return 1


def dilation_forward(x_nchw, params):
    """x_nchw: (N, C, H, W) float32. Returns (N, C, H, W) float32."""
    N, C, H, W = x_nchw.shape
    HW = H * W
    K = NTAP * C
    Kp = ((K + 7) // 8) * 8                 # pad K rows to a sublane multiple
    G = _group_size(N)
    NG = N // G

    # ---- wrapper-side im2col (lane-dense, bf16) -------------------------------
    x_pad = jnp.pad(x_nchw, ((0, 0), (0, 0), (PAD, PAD), (PAD, PAD)))
    branch_cols = []
    for b in range(NB):
        d = b + 1
        taps = []
        for ki in range(3):
            for kj in range(3):
                oh = PAD - d + d * ki
                ow = PAD - d + d * kj
                taps.append(x_pad[:, :, oh:oh + H, ow:ow + W])     # (N, C, H, W)
        tb = jnp.stack(taps, axis=1).reshape(N, K, HW)             # rows = tap*C + cin
        branch_cols.append(tb)
    xcol = jnp.stack(branch_cols, axis=1)                          # (N, NB, K, HW)
    xcol = jnp.pad(xcol, ((0, 0), (0, 0), (0, Kp - K), (0, 0)))    # (N, NB, Kp, HW)
    xcol = (xcol.reshape(NG, G, NB, Kp, HW)
                .transpose(0, 2, 3, 1, 4)
                .reshape(NG, NB, Kp, G * HW)
                .astype(jnp.bfloat16))                             # columns = (img, hw)

    # ---- fold parameters into kernel operands ---------------------------------
    # per-branch fused depthwise*pointwise weight: W[o, tap*C + i] = pw[o,i]*dw[i,tap]
    wf = jnp.zeros((NB, C, Kp), jnp.float32)
    for b in range(NB):
        dwf = params["dw"][b][:, 0].reshape(C, NTAP)               # [cin, tap]
        w = jnp.einsum("oi,it->oti", params["pw"][b], dwf).reshape(C, K)
        wf = wf.at[b, :, :K].set(w)
    wf = wf.astype(jnp.bfloat16)                                   # (NB, C, Kp)

    bsc = jnp.stack([params["bn_g"][b] / jnp.sqrt(params["bn_v"][b] + EPS)
                     for b in range(NB)])                          # (NB, C)
    bsh = jnp.stack([params["bn_b"][b] - params["bn_m"][b] * bsc[b]
                     for b in range(NB)])                          # (NB, C)
    bsc = bsc.reshape(NB, C, 1)
    bsh = bsh.reshape(NB, C, 1)

    # skip 1x1 weight split per branch (concat order = branch-major channels)
    skw = (params["sk_w"].reshape(C, NB, C)
           .transpose(1, 0, 2)
           .astype(jnp.bfloat16))                                  # (NB, C, C)
    ssc_vec = params["sbn_g"] / jnp.sqrt(params["sbn_v"] + EPS)    # (C,)
    ssc = ssc_vec.reshape(C, 1)
    ssh = (params["sbn_b"] - params["sbn_m"] * ssc_vec
           + params["sk_b"] * ssc_vec).reshape(C, 1)

    out = pl.pallas_call(
        _dilation_kernel,
        out_shape=jax.ShapeDtypeStruct((NG, C, G * HW), jnp.float32),
        grid_spec=pltpu.PrefetchScalarGridSpec(
            num_scalar_prefetch=0,
            grid=(NG,),
            in_specs=[
                pl.BlockSpec((1, NB, Kp, G * HW), lambda g: (g, 0, 0, 0)),
                pl.BlockSpec((NB, C, Kp), lambda g: (0, 0, 0)),
                pl.BlockSpec((NB, C, 1), lambda g: (0, 0, 0)),
                pl.BlockSpec((NB, C, 1), lambda g: (0, 0, 0)),
                pl.BlockSpec((NB, C, C), lambda g: (0, 0, 0)),
                pl.BlockSpec((C, 1), lambda g: (0, 0)),
                pl.BlockSpec((C, 1), lambda g: (0, 0)),
            ],
            out_specs=pl.BlockSpec((1, C, G * HW), lambda g: (g, 0, 0)),
        ),
        compiler_params=pltpu.CompilerParams(
            dimension_semantics=("parallel",)),
    )(xcol, wf, bsc, bsh, skw, ssc, ssh)

    # restore NCHW: (NG, C, G, H, W) -> (NG, G, C, H, W) -> (N, C, H, W)
    out = (out.reshape(NG, C, G, H, W)
              .transpose(0, 2, 1, 3, 4)
              .reshape(N, C, H, W))
    return out


# -------------------- pure-JAX reference (for verification) --------------------
def dilation_reference(x_nchw, params):
    N, C, H, W = x_nchw.shape
    x = jnp.transpose(x_nchw, (0, 2, 3, 1))  # NHWC
    branches = []
    for b in range(NB):
        d = b + 1
        k = jnp.transpose(params["dw"][b], (2, 3, 1, 0))  # (3,3,1,C) HWIO
        y = lax.conv_general_dilated(
            x, k, window_strides=(1, 1), padding=[(d, d), (d, d)],
            rhs_dilation=(d, d),
            dimension_numbers=("NHWC", "HWIO", "NHWC"),
            feature_group_count=C)
        y = jnp.einsum("nhwi,oi->nhwo", y, params["pw"][b])
        sc = params["bn_g"][b] / jnp.sqrt(params["bn_v"][b] + EPS)
        sh = params["bn_b"][b] - params["bn_m"][b] * sc
        y = jnp.maximum(y * sc + sh, 0.0)
        branches.append(y)
    cat = jnp.concatenate(branches, axis=-1)  # (N,H,W,4C)
    z = jnp.einsum("nhwi,oi->nhwo", cat, params["sk_w"]) + params["sk_b"]
    ssc = params["sbn_g"] / jnp.sqrt(params["sbn_v"] + EPS)
    ssh = params["sbn_b"] - params["sbn_m"] * ssc
    z = jnp.maximum(z * ssc + ssh, 0.0)
    return jnp.transpose(z, (0, 3, 1, 2))


def make_params(key, C):
    keys = jax.random.split(key, 32)
    it = iter(range(32))
    nk = lambda: keys[next(it)]
    p = {
        "dw": [0.2 * jax.random.normal(nk(), (C, 1, 3, 3), jnp.float32)
               for _ in range(4)],
        "pw": [0.2 * jax.random.normal(nk(), (C, C), jnp.float32)
               for _ in range(4)],
        "bn_g": [1.0 + 0.1 * jax.random.normal(nk(), (C,), jnp.float32)
                 for _ in range(4)],
        "bn_b": [0.1 * jax.random.normal(nk(), (C,), jnp.float32)
                 for _ in range(4)],
        "bn_m": [0.1 * jax.random.normal(nk(), (C,), jnp.float32)
                 for _ in range(4)],
        "bn_v": [jax.random.uniform(nk(), (C,), jnp.float32, 0.5, 1.5)
                 for _ in range(4)],
        "sk_w": 0.2 * jax.random.normal(nk(), (C, 4 * C), jnp.float32),
        "sk_b": 0.1 * jax.random.normal(nk(), (C,), jnp.float32),
        "sbn_g": 1.0 + 0.1 * jax.random.normal(nk(), (C,), jnp.float32),
        "sbn_b": 0.1 * jax.random.normal(nk(), (C,), jnp.float32),
        "sbn_m": 0.1 * jax.random.normal(nk(), (C,), jnp.float32),
        "sbn_v": jax.random.uniform(nk(), (C,), jnp.float32, 0.5, 1.5),
    }
    return p


if __name__ == "__main__":
    key = jax.random.PRNGKey(0)
    kx, kp = jax.random.split(key)
    N, C, H, W = 2, 4, 16, 16
    x = jax.random.normal(kx, (N, C, H, W), jnp.float32)
    params = make_params(kp, C)

    out = dilation_forward(x, params)
    out = jax.block_until_ready(out)

    ref = dilation_reference(x, params)
    assert out.shape == (N, C, H, W)
    # bf16 matmuls with f32 accumulation and f32 BN epilogues => modest tolerance.
    assert jnp.allclose(out, ref, rtol=3e-2, atol=3e-2), (
        float(jnp.max(jnp.abs(out - ref))))
    print("KERNEL_OK")
</pallas_src>

<mosaic_0001>
module attributes {stable_mosaic.version = 11 : i64} {
  func.func @_dilation_kernel(%arg0: i32, %arg1: memref<1x4x40x512xbf16, #tpu.memory_space<vmem>>, %arg2: memref<4x4x40xbf16, #tpu.memory_space<vmem>>, %arg3: memref<4x4x1xf32, #tpu.memory_space<vmem>>, %arg4: memref<4x4x1xf32, #tpu.memory_space<vmem>>, %arg5: memref<4x4x4xbf16, #tpu.memory_space<vmem>>, %arg6: memref<4x1xf32, #tpu.memory_space<vmem>>, %arg7: memref<4x1xf32, #tpu.memory_space<vmem>>, %arg8: memref<1x4x512xf32, #tpu.memory_space<vmem>>) attributes {dimension_semantics = [#tpu.dimension_semantics<parallel>], iteration_bounds = array<i64: 1>, scalar_prefetch = 0 : i64, scratch_operands = 0 : i64, tpu.core_type = #tpu.core_type<tc>, window_params = [{transform_indices = @transform_0, window_bounds = array<i64: 1, 4, 40, 512>}, {pipeline_mode = #tpu.pipeline_mode<synchronous>, transform_indices = @transform_1, window_bounds = array<i64: 4, 4, 40>}, {pipeline_mode = #tpu.pipeline_mode<synchronous>, transform_indices = @transform_2, window_bounds = array<i64: 4, 4, 1>}, {pipeline_mode = #tpu.pipeline_mode<synchronous>, transform_indices = @transform_3, window_bounds = array<i64: 4, 4, 1>}, {pipeline_mode = #tpu.pipeline_mode<synchronous>, transform_indices = @transform_4, window_bounds = array<i64: 4, 4, 4>}, {pipeline_mode = #tpu.pipeline_mode<synchronous>, transform_indices = @transform_5, window_bounds = array<i64: 4, 1>}, {pipeline_mode = #tpu.pipeline_mode<synchronous>, transform_indices = @transform_6, window_bounds = array<i64: 4, 1>}, {transform_indices = @transform_7, window_bounds = array<i64: 1, 4, 512>}]} {
    %c0 = arith.constant 0 : index
    %c0_0 = arith.constant 0 : index
    %c0_1 = arith.constant 0 : index
    %0 = vector.load %arg2[%c0, %c0_0, %c0_1] : memref<4x4x40xbf16, #tpu.memory_space<vmem>>, vector<1x4x40xbf16>
    %1 = vector.shape_cast %0 : vector<1x4x40xbf16> to vector<4x40xbf16>
    %c0_2 = arith.constant 0 : index
    %c0_3 = arith.constant 0 : index
    %c0_4 = arith.constant 0 : index
    %c0_5 = arith.constant 0 : index
    %2 = vector.load %arg1[%c0_2, %c0_3, %c0_4, %c0_5] : memref<1x4x40x512xbf16, #tpu.memory_space<vmem>>, vector<1x1x40x512xbf16>
    %3 = vector.shape_cast %2 : vector<1x1x40x512xbf16> to vector<40x512xbf16>
    %cst = arith.constant dense<0.000000e+00> : vector<4x512xf32>
    %4 = tpu.matmul %1, %3, %cst {dimension_numbers = #tpu.dot_dimension_numbers<[1], [0], [0], [1], [0, 0, 1, 1], [], []>} : vector<4x40xbf16>, vector<40x512xbf16>, vector<4x512xf32> -> vector<4x512xf32>
    %c0_6 = arith.constant 0 : index
    %c0_7 = arith.constant 0 : index
    %c0_8 = arith.constant 0 : index
    %5 = vector.load %arg3[%c0_6, %c0_7, %c0_8] : memref<4x4x1xf32, #tpu.memory_space<vmem>>, vector<1x4x1xf32>
    %6 = vector.shape_cast %5 : vector<1x4x1xf32> to vector<4x1xf32>
    %7 = vector.broadcast %6 : vector<4x1xf32> to vector<4x512xf32>
    %8 = arith.mulf %4, %7 : vector<4x512xf32>
    %c0_9 = arith.constant 0 : index
    %c0_10 = arith.constant 0 : index
    %c0_11 = arith.constant 0 : index
    %9 = vector.load %arg4[%c0_9, %c0_10, %c0_11] : memref<4x4x1xf32, #tpu.memory_space<vmem>>, vector<1x4x1xf32>
    %10 = vector.shape_cast %9 : vector<1x4x1xf32> to vector<4x1xf32>
    %11 = vector.broadcast %10 : vector<4x1xf32> to vector<4x512xf32>
    %12 = arith.addf %8, %11 : vector<4x512xf32>
    %cst_12 = arith.constant 0.000000e+00 : f32
    %13 = vector.broadcast %cst_12 : f32 to vector<4x512xf32>
    %14 = arith.maximumf %12, %13 : vector<4x512xf32>
    %c0_13 = arith.constant 0 : index
    %c0_14 = arith.constant 0 : index
    %c0_15 = arith.constant 0 : index
    %15 = vector.load %arg5[%c0_13, %c0_14, %c0_15] : memref<4x4x4xbf16, #tpu.memory_space<vmem>>, vector<1x4x4xbf16>
    %16 = vector.shape_cast %15 : vector<1x4x4xbf16> to vector<4x4xbf16>
    %17 = arith.truncf %14 : vector<4x512xf32> to vector<4x512xbf16>
    %cst_16 = arith.constant dense<0.000000e+00> : vector<4x512xf32>
    %18 = tpu.matmul %16, %17, %cst_16 {dimension_numbers = #tpu.dot_dimension_numbers<[1], [0], [0], [1], [0, 0, 1, 1], [], []>} : vector<4x4xbf16>, vector<4x512xbf16>, vector<4x512xf32> -> vector<4x512xf32>
    %c1 = arith.constant 1 : index
    %c0_17 = arith.constant 0 : index
    %c0_18 = arith.constant 0 : index
    %19 = vector.load %arg2[%c1, %c0_17, %c0_18] : memref<4x4x40xbf16, #tpu.memory_space<vmem>>, vector<1x4x40xbf16>
    %20 = vector.shape_cast %19 : vector<1x4x40xbf16> to vector<4x40xbf16>
    %c0_19 = arith.constant 0 : index
    %c1_20 = arith.constant 1 : index
    %c0_21 = arith.constant 0 : index
    %c0_22 = arith.constant 0 : index
    %21 = vector.load %arg1[%c0_19, %c1_20, %c0_21, %c0_22] : memref<1x4x40x512xbf16, #tpu.memory_space<vmem>>, vector<1x1x40x512xbf16>
    %22 = vector.shape_cast %21 : vector<1x1x40x512xbf16> to vector<40x512xbf16>
    %cst_23 = arith.constant dense<0.000000e+00> : vector<4x512xf32>
    %23 = tpu.matmul %20, %22, %cst_23 {dimension_numbers = #tpu.dot_dimension_numbers<[1], [0], [0], [1], [0, 0, 1, 1], [], []>} : vector<4x40xbf16>, vector<40x512xbf16>, vector<4x512xf32> -> vector<4x512xf32>
    %c1_24 = arith.constant 1 : index
    %c0_25 = arith.constant 0 : index
    %c0_26 = arith.constant 0 : index
    %24 = vector.load %arg3[%c1_24, %c0_25, %c0_26] : memref<4x4x1xf32, #tpu.memory_space<vmem>>, vector<1x4x1xf32>
    %25 = vector.shape_cast %24 : vector<1x4x1xf32> to vector<4x1xf32>
    %26 = vector.broadcast %25 : vector<4x1xf32> to vector<4x512xf32>
    %27 = arith.mulf %23, %26 : vector<4x512xf32>
    %c1_27 = arith.constant 1 : index
    %c0_28 = arith.constant 0 : index
    %c0_29 = arith.constant 0 : index
    %28 = vector.load %arg4[%c1_27, %c0_28, %c0_29] : memref<4x4x1xf32, #tpu.memory_space<vmem>>, vector<1x4x1xf32>
    %29 = vector.shape_cast %28 : vector<1x4x1xf32> to vector<4x1xf32>
    %30 = vector.broadcast %29 : vector<4x1xf32> to vector<4x512xf32>
    %31 = arith.addf %27, %30 : vector<4x512xf32>
    %cst_30 = arith.constant 0.000000e+00 : f32
    %32 = vector.broadcast %cst_30 : f32 to vector<4x512xf32>
    %33 = arith.maximumf %31, %32 : vector<4x512xf32>
    %c1_31 = arith.constant 1 : index
    %c0_32 = arith.constant 0 : index
    %c0_33 = arith.constant 0 : index
    %34 = vector.load %arg5[%c1_31, %c0_32, %c0_33] : memref<4x4x4xbf16, #tpu.memory_space<vmem>>, vector<1x4x4xbf16>
    %35 = vector.shape_cast %34 : vector<1x4x4xbf16> to vector<4x4xbf16>
    %36 = arith.truncf %33 : vector<4x512xf32> to vector<4x512xbf16>
    %cst_34 = arith.constant dense<0.000000e+00> : vector<4x512xf32>
    %37 = tpu.matmul %35, %36, %cst_34 {dimension_numbers = #tpu.dot_dimension_numbers<[1], [0], [0], [1], [0, 0, 1, 1], [], []>} : vector<4x4xbf16>, vector<4x512xbf16>, vector<4x512xf32> -> vector<4x512xf32>
    %38 = arith.addf %18, %37 : vector<4x512xf32>
    %c2 = arith.constant 2 : index
    %c0_35 = arith.constant 0 : index
    %c0_36 = arith.constant 0 : index
    %39 = vector.load %arg2[%c2, %c0_35, %c0_36] : memref<4x4x40xbf16, #tpu.memory_space<vmem>>, vector<1x4x40xbf16>
    %40 = vector.shape_cast %39 : vector<1x4x40xbf16> to vector<4x40xbf16>
    %c0_37 = arith.constant 0 : index
    %c2_38 = arith.constant 2 : index
    %c0_39 = arith.constant 0 : index
    %c0_40 = arith.constant 0 : index
    %41 = vector.load %arg1[%c0_37, %c2_38, %c0_39, %c0_40] : memref<1x4x40x512xbf16, #tpu.memory_space<vmem>>, vector<1x1x40x512xbf16>
    %42 = vector.shape_cast %41 : vector<1x1x40x512xbf16> to vector<40x512xbf16>
    %cst_41 = arith.constant dense<0.000000e+00> : vector<4x512xf32>
    %43 = tpu.matmul %40, %42, %cst_41 {dimension_numbers = #tpu.dot_dimension_numbers<[1], [0], [0], [1], [0, 0, 1, 1], [], []>} : vector<4x40xbf16>, vector<40x512xbf16>, vector<4x512xf32> -> vector<4x512xf32>
    %c2_42 = arith.constant 2 : index
    %c0_43 = arith.constant 0 : index
    %c0_44 = arith.constant 0 : index
    %44 = vector.load %arg3[%c2_42, %c0_43, %c0_44] : memref<4x4x1xf32, #tpu.memory_space<vmem>>, vector<1x4x1xf32>
    %45 = vector.shape_cast %44 : vector<1x4x1xf32> to vector<4x1xf32>
    %46 = vector.broadcast %45 : vector<4x1xf32> to vector<4x512xf32>
    %47 = arith.mulf %43, %46 : vector<4x512xf32>
    %c2_45 = arith.constant 2 : index
    %c0_46 = arith.constant 0 : index
    %c0_47 = arith.constant 0 : index
    %48 = vector.load %arg4[%c2_45, %c0_46, %c0_47] : memref<4x4x1xf32, #tpu.memory_space<vmem>>, vector<1x4x1xf32>
    %49 = vector.shape_cast %48 : vector<1x4x1xf32> to vector<4x1xf32>
    %50 = vector.broadcast %49 : vector<4x1xf32> to vector<4x512xf32>
    %51 = arith.addf %47, %50 : vector<4x512xf32>
    %cst_48 = arith.constant 0.000000e+00 : f32
    %52 = vector.broadcast %cst_48 : f32 to vector<4x512xf32>
    %53 = arith.maximumf %51, %52 : vector<4x512xf32>
    %c2_49 = arith.constant 2 : index
    %c0_50 = arith.constant 0 : index
    %c0_51 = arith.constant 0 : index
    %54 = vector.load %arg5[%c2_49, %c0_50, %c0_51] : memref<4x4x4xbf16, #tpu.memory_space<vmem>>, vector<1x4x4xbf16>
    %55 = vector.shape_cast %54 : vector<1x4x4xbf16> to vector<4x4xbf16>
    %56 = arith.truncf %53 : vector<4x512xf32> to vector<4x512xbf16>
    %cst_52 = arith.constant dense<0.000000e+00> : vector<4x512xf32>
    %57 = tpu.matmul %55, %56, %cst_52 {dimension_numbers = #tpu.dot_dimension_numbers<[1], [0], [0], [1], [0, 0, 1, 1], [], []>} : vector<4x4xbf16>, vector<4x512xbf16>, vector<4x512xf32> -> vector<4x512xf32>
    %58 = arith.addf %38, %57 : vector<4x512xf32>
    %c3 = arith.constant 3 : index
    %c0_53 = arith.constant 0 : index
    %c0_54 = arith.constant 0 : index
    %59 = vector.load %arg2[%c3, %c0_53, %c0_54] : memref<4x4x40xbf16, #tpu.memory_space<vmem>>, vector<1x4x40xbf16>
    %60 = vector.shape_cast %59 : vector<1x4x40xbf16> to vector<4x40xbf16>
    %c0_55 = arith.constant 0 : index
    %c3_56 = arith.constant 3 : index
    %c0_57 = arith.constant 0 : index
    %c0_58 = arith.constant 0 : index
    %61 = vector.load %arg1[%c0_55, %c3_56, %c0_57, %c0_58] : memref<1x4x40x512xbf16, #tpu.memory_space<vmem>>, vector<1x1x40x512xbf16>
    %62 = vector.shape_cast %61 : vector<1x1x40x512xbf16> to vector<40x512xbf16>
    %cst_59 = arith.constant dense<0.000000e+00> : vector<4x512xf32>
    %63 = tpu.matmul %60, %62, %cst_59 {dimension_numbers = #tpu.dot_dimension_numbers<[1], [0], [0], [1], [0, 0, 1, 1], [], []>} : vector<4x40xbf16>, vector<40x512xbf16>, vector<4x512xf32> -> vector<4x512xf32>
    %c3_60 = arith.constant 3 : index
    %c0_61 = arith.constant 0 : index
    %c0_62 = arith.constant 0 : index
    %64 = vector.load %arg3[%c3_60, %c0_61, %c0_62] : memref<4x4x1xf32, #tpu.memory_space<vmem>>, vector<1x4x1xf32>
    %65 = vector.shape_cast %64 : vector<1x4x1xf32> to vector<4x1xf32>
    %66 = vector.broadcast %65 : vector<4x1xf32> to vector<4x512xf32>
    %67 = arith.mulf %63, %66 : vector<4x512xf32>
    %c3_63 = arith.constant 3 : index
    %c0_64 = arith.constant 0 : index
    %c0_65 = arith.constant 0 : index
    %68 = vector.load %arg4[%c3_63, %c0_64, %c0_65] : memref<4x4x1xf32, #tpu.memory_space<vmem>>, vector<1x4x1xf32>
    %69 = vector.shape_cast %68 : vector<1x4x1xf32> to vector<4x1xf32>
    %70 = vector.broadcast %69 : vector<4x1xf32> to vector<4x512xf32>
    %71 = arith.addf %67, %70 : vector<4x512xf32>
    %cst_66 = arith.constant 0.000000e+00 : f32
    %72 = vector.broadcast %cst_66 : f32 to vector<4x512xf32>
    %73 = arith.maximumf %71, %72 : vector<4x512xf32>
    %c3_67 = arith.constant 3 : index
    %c0_68 = arith.constant 0 : index
    %c0_69 = arith.constant 0 : index
    %74 = vector.load %arg5[%c3_67, %c0_68, %c0_69] : memref<4x4x4xbf16, #tpu.memory_space<vmem>>, vector<1x4x4xbf16>
    %75 = vector.shape_cast %74 : vector<1x4x4xbf16> to vector<4x4xbf16>
    %76 = arith.truncf %73 : vector<4x512xf32> to vector<4x512xbf16>
    %cst_70 = arith.constant dense<0.000000e+00> : vector<4x512xf32>
    %77 = tpu.matmul %75, %76, %cst_70 {dimension_numbers = #tpu.dot_dimension_numbers<[1], [0], [0], [1], [0, 0, 1, 1], [], []>} : vector<4x4xbf16>, vector<4x512xbf16>, vector<4x512xf32> -> vector<4x512xf32>
    %78 = arith.addf %58, %77 : vector<4x512xf32>
    %c0_71 = arith.constant 0 : index
    %c0_72 = arith.constant 0 : index
    %79 = vector.load %arg6[%c0_71, %c0_72] : memref<4x1xf32, #tpu.memory_space<vmem>>, vector<4x1xf32>
    %80 = vector.broadcast %79 : vector<4x1xf32> to vector<4x512xf32>
    %81 = arith.mulf %78, %80 : vector<4x512xf32>
    %c0_73 = arith.constant 0 : index
    %c0_74 = arith.constant 0 : index
    %82 = vector.load %arg7[%c0_73, %c0_74] : memref<4x1xf32, #tpu.memory_space<vmem>>, vector<4x1xf32>
    %83 = vector.broadcast %82 : vector<4x1xf32> to vector<4x512xf32>
    %84 = arith.addf %81, %83 : vector<4x512xf32>
    %cst_75 = arith.constant 0.000000e+00 : f32
    %85 = vector.broadcast %cst_75 : f32 to vector<4x512xf32>
    %86 = arith.maximumf %84, %85 : vector<4x512xf32>
    %c0_76 = arith.constant 0 : index
    %c0_77 = arith.constant 0 : index
    %c0_78 = arith.constant 0 : index
    %87 = vector.load %arg8[%c0_76, %c0_77, %c0_78] : memref<1x4x512xf32, #tpu.memory_space<vmem>>, vector<1x4x512xf32>
    %88 = vector.shape_cast %87 : vector<1x4x512xf32> to vector<4x512xf32>
    %89 = vector.shape_cast %86 : vector<4x512xf32> to vector<1x4x512xf32>
    tpu.vector_store %arg8[%c0_76, %c0_77, %c0_78], %89 {strides = array<i32>} : memref<1x4x512xf32, #tpu.memory_space<vmem>>, vector<1x4x512xf32>,
    return
  }
  func.func @transform_0(%arg0: i32) -> (i32, i32, i32, i32) {
    %c0_i32 = arith.constant 0 : i32
    %c0_i32_0 = arith.constant 0 : i32
    %c0_i32_1 = arith.constant 0 : i32
    %c0_i32_2 = arith.constant 0 : i32
    return %arg0, %c0_i32, %c0_i32_0, %c0_i32_1 : i32, i32, i32, i32
  }
  func.func @transform_1(%arg0: i32) -> (i32, i32, i32) {
    %c0_i32 = arith.constant 0 : i32
    %c0_i32_0 = arith.constant 0 : i32
    %c0_i32_1 = arith.constant 0 : i32
    %c0_i32_2 = arith.constant 0 : i32
    return %c0_i32, %c0_i32_0, %c0_i32_1 : i32, i32, i32
  }
  func.func @transform_2(%arg0: i32) -> (i32, i32, i32) {
    %c0_i32 = arith.constant 0 : i32
    %c0_i32_0 = arith.constant 0 : i32
    %c0_i32_1 = arith.constant 0 : i32
    %c0_i32_2 = arith.constant 0 : i32
    return %c0_i32, %c0_i32_0, %c0_i32_1 : i32, i32, i32
  }
  func.func @transform_3(%arg0: i32) -> (i32, i32, i32) {
    %c0_i32 = arith.constant 0 : i32
    %c0_i32_0 = arith.constant 0 : i32
    %c0_i32_1 = arith.constant 0 : i32
    %c0_i32_2 = arith.constant 0 : i32
    return %c0_i32, %c0_i32_0, %c0_i32_1 : i32, i32, i32
  }
  func.func @transform_4(%arg0: i32) -> (i32, i32, i32) {
    %c0_i32 = arith.constant 0 : i32
    %c0_i32_0 = arith.constant 0 : i32
    %c0_i32_1 = arith.constant 0 : i32
    %c0_i32_2 = arith.constant 0 : i32
    return %c0_i32, %c0_i32_0, %c0_i32_1 : i32, i32, i32
  }
  func.func @transform_5(%arg0: i32) -> (i32, i32) {
    %c0_i32 = arith.constant 0 : i32
    %c0_i32_0 = arith.constant 0 : i32
    %c0_i32_1 = arith.constant 0 : i32
    return %c0_i32, %c0_i32_0 : i32, i32
  }
  func.func @transform_6(%arg0: i32) -> (i32, i32) {
    %c0_i32 = arith.constant 0 : i32
    %c0_i32_0 = arith.constant 0 : i32
    %c0_i32_1 = arith.constant 0 : i32
    return %c0_i32, %c0_i32_0 : i32, i32
  }
  func.func @transform_7(%arg0: i32) -> (i32, i32, i32) {
    %c0_i32 = arith.constant 0 : i32
    %c0_i32_0 = arith.constant 0 : i32
    %c0_i32_1 = arith.constant 0 : i32
    return %arg0, %c0_i32, %c0_i32_0 : i32, i32, i32
  }
}

</mosaic_0001>

<llo_original>
// kernel: tpu_custom_call.1
$region0: #{tpu_custom_call.1}
  #allocation0 [shape = 'u32[]', space=smem, size = 0x4, offset = 0x4, fixed_abs, tag = 'smem constant byte address 0x4 - core index']
  #allocation1 [shape = 'u32[144,128]{1,0:T(1,128)}', space=vmem, size = 0x12000, scoped, tag = 'internal scratch']
  %s0 = inlined_call_operand.hbm [shape: bf16[1,4,40,512], index: 0, kind: input, shape index: {}]
  %s1 = inlined_call_operand.vmem [shape: bf16[4,4,40], index: 1, kind: input, shape index: {}]
  %s2 = inlined_call_operand.vmem [shape: f32[4,4,1], index: 2, kind: input, shape index: {}]
  %s3 = inlined_call_operand.vmem [shape: f32[4,4,1], index: 3, kind: input, shape index: {}]
  %s4 = inlined_call_operand.vmem [shape: bf16[4,4,4], index: 4, kind: input, shape index: {}]
  %s5 = inlined_call_operand.vmem [shape: f32[4,1], index: 5, kind: input, shape index: {}]
  %s6 = inlined_call_operand.vmem [shape: f32[4,1], index: 6, kind: input, shape index: {}]
  %s7 = inlined_call_operand.hbm [shape: f32[1,4,512], index: 7, kind: output, shape index: {}]
  %s8 = sld [smem:[#allocation0]]
  $region42: #{tpu_custom_call.1} parent=0
    _
  %s10 = ssub.s32 1, %s8
  %s11 = scalar_select 0, %s10, %s8
  $region1: #{tpu_custom_call.1} parent=0
    #allocation2 [shape = 'u8[163840]{0}', space=vmem, size = 0x28000, scoped, tag = 'input window, operand 0, single buffered']
    #allocation3 [shape = 's32[1]{0}', space=sflag, size = 0x4, scoped, tag = 'scoped memory for tpu_custom_call.1']
    #allocation4 [shape = 's32[1]{0}', space=sflag, size = 0x4, scoped, tag = 'scoped memory for tpu_custom_call.1']
    #allocation5 [shape = 'u8[8192]{0}', space=vmem, size = 0x2000, scoped, tag = 'output window, operand 0, single buffered']
    %12 = vsyncpa [#allocation3], 0
    %13 = vsyncpa [#allocation4], 0
    // Predicated region
    $region2: #{tpu_custom_call.1} parent=1 // pred_check
      _
    $region3: #{tpu_custom_call.1} parent=1 // pred_check_branch
      %15 = sbr.rel (0) target = $region5
    $region4: #{tpu_custom_call.1} parent=1 // pred_region
      %s17 = ssub.s32 5120, 5120
      %18 = vsyncadd [#allocation3], %s17
      %s19 = sshll.u32 [#allocation2], 4
      %s20 = int_to_ptr.vmem [resolvable:$true] %s19
      %25 = dma.hbm_to_vmem [thread:$0]  %s0, 5120, %s20, [#allocation3], 256, 256, 16
    $region5: #{tpu_custom_call.1} parent=1 // pred_fallthru
      _
    // Predicated region
    $region6: #{tpu_custom_call.1} parent=1 // pred_check
      _
    $region7: #{tpu_custom_call.1} parent=1 // pred_check_branch
      %27 = sbr.rel (0) target = $region9
    $region8: #{tpu_custom_call.1} parent=1 // pred_region
      _
    $region9: #{tpu_custom_call.1} parent=1 // pred_fallthru
      _
    // Predicated region
    $region10: #{tpu_custom_call.1} parent=1 // pred_check
      _
    $region11: #{tpu_custom_call.1} parent=1 // pred_check_branch
      %29 = sbr.rel (0) target = $region13
    $region12: #{tpu_custom_call.1} parent=1 // pred_region
      _
    $region13: #{tpu_custom_call.1} parent=1 // pred_fallthru
      _
    // Predicated region
    $region14: #{tpu_custom_call.1} parent=1 // pred_check
      _
    $region15: #{tpu_custom_call.1} parent=1 // pred_check_branch
      %31 = sbr.rel (0) target = $region17
    $region16: #{tpu_custom_call.1} parent=1 // pred_region
      _
    $region17: #{tpu_custom_call.1} parent=1 // pred_fallthru
      _
    // Predicated region
    $region18: #{tpu_custom_call.1} parent=1 // pred_check
      _
    $region19: #{tpu_custom_call.1} parent=1 // pred_check_branch
      %33 = sbr.rel (0) target = $region21
    $region20: #{tpu_custom_call.1} parent=1 // pred_region
      _
    $region21: #{tpu_custom_call.1} parent=1 // pred_fallthru
      _
    // Predicated region
    $region22: #{tpu_custom_call.1} parent=1 // pred_check
      _
    $region23: #{tpu_custom_call.1} parent=1 // pred_check_branch
      %35 = sbr.rel (0) target = $region25
    $region24: #{tpu_custom_call.1} parent=1 // pred_region
      _
    $region25: #{tpu_custom_call.1} parent=1 // pred_fallthru
      _
    // Predicated region
    $region26: #{tpu_custom_call.1} parent=1 // pred_check
      _
    $region27: #{tpu_custom_call.1} parent=1 // pred_check_branch
      %37 = sbr.rel (0) target = $region29
    $region28: #{tpu_custom_call.1} parent=1 // pred_region
      _
    $region29: #{tpu_custom_call.1} parent=1 // pred_fallthru
      _
    // Predicated region
    $region30: #{tpu_custom_call.1} parent=1 // pred_check
      _
    $region31: #{tpu_custom_call.1} parent=1 // pred_check_branch
      %39 = sbr.rel (0) target = $region33
    $region32: #{tpu_custom_call.1} parent=1 // pred_region
      %40 = dma.done [#allocation3], 5120
    $region33: #{tpu_custom_call.1} parent=1 // pred_fallthru
      _
    %v42 = vld [vmem:[%s1] sm:$0x3]
    %v43 = vld [vmem:[#allocation2] sm:$0xff]
    %v44 = vld [vmem:[#allocation2 + $0x8] sm:$0xff]
    %v45 = vld [vmem:[#allocation2 + $0x10] sm:$0xff]
    %v46 = vld [vmem:[#allocation2 + $0x18] sm:$0xff]
    %v47 = vld [vmem:[#allocation2 + $0x20] sm:$0xff]
    %v48 = vld [vmem:[#allocation2 + $0x28] sm:$0xff]
    %v49 = vld [vmem:[#allocation2 + $0x30] sm:$0xff]
    %v50 = vld [vmem:[#allocation2 + $0x38] sm:$0xff]
    %v51 = vld [vmem:[#allocation2 + $0x40] sm:$0xff]
    %v52 = vld [vmem:[#allocation2 + $0x48] sm:$0xff]
    %v63 = vunpack.c.l.b16 %v43
    %v64 = vunpack.c.h.b16 %v43
    %v65 = vunpack.c.l.b16 %v44
    %v66 = vunpack.c.h.b16 %v44
    %v67 = vunpack.c.l.b16 %v45
    %v68 = vunpack.c.h.b16 %v45
    %v69 = vunpack.c.l.b16 %v46
    %v70 = vunpack.c.h.b16 %v46
    %v71 = vunpack.c.l.b16 %v47
    %v72 = vunpack.c.h.b16 %v47
    %v73 = vunpack.c.l.b16 %v48
    %v74 = vunpack.c.h.b16 %v48
    %v75 = vunpack.c.l.b16 %v49
    %v76 = vunpack.c.h.b16 %v49
    %v77 = vunpack.c.l.b16 %v50
    %v78 = vunpack.c.h.b16 %v50
    %v79 = vunpack.c.l.b16 %v51
    %v80 = vunpack.c.h.b16 %v51
    %v81 = vunpack.c.l.b16 %v52
    %v82 = vunpack.c.h.b16 %v52
    %v83 = vpack.c.b16 %v67, %v63
    %v84 = vpack.c.b16 %v68, %v64
    %v85 = vpack.c.b16 %v69, %v65
    %v86 = vpack.c.b16 %v70, %v66
    %v87 = vpack.c.b16 %v75, %v71
    %v88 = vpack.c.b16 %v76, %v72
    %v89 = vpack.c.b16 %v77, %v73
    %v90 = vpack.c.b16 %v78, %v74
    %v91 = vpack.c.b16 %v79, %v79
    %v92 = vpack.c.b16 %v80, %v80
    %v93 = vpack.c.b16 %v81, %v81
    %v94 = vpack.c.b16 %v82, %v82
    %vm103 = vcmask 326656
    %v105 = vsel %vm103, %v42, 0
    %vm107 = vcmask 1043456
    %v109 = vsel %vm107, %v91, 0
    %v112 = vsel %vm107, %v92, 0
    %v115 = vsel %vm107, %v93, 0
    %v118 = vsel %vm107, %v94, 0
    %120 = vmatprep.subr.bf16.mxu0 %v84
    %121 = vmatpush1.bf16.msra.mxu0 %v83
    %122 = vmatprep.subr.bf16.mxu0 %v88
    %123 = vmatpush1.bf16.msra.mxu0 %v87
    %124 = vmatprep.subr.bf16.mxu0 %v112
    %125 = vmatpush1.bf16.msra.mxu0 %v109
    %126 = vmatprep.subr.bf16.mxu0 0
    %127 = vmatpush1.bf16.msra.mxu0 0
    %128 = vmatprep.subr.bf16.mxu0 0
    %129 = vmatpush1.bf16.msra.mxu0 0
    %130 = vmatprep.subr.bf16.mxu0 0
    %131 = vmatpush1.bf16.msra.mxu0 0
    %132 = vmatprep.subr.bf16.mxu0 0
    %133 = vmatpush1.bf16.msra.mxu0 0
    %134 = vmatprep.subr.bf16.mxu0 0
    %135 = vmatpush1.bf16.msra.mxu0 0
    %136 = vmatprep.subr.bf16.mxu0 0
    %137 = vmatpush1.bf16.msra.mxu0 0
    %138 = vmatprep.subr.bf16.mxu0 0
    %139 = vmatpush1.bf16.msra.mxu0 0
    %140 = vmatprep.subr.bf16.mxu0 0
    %141 = vmatpush1.bf16.msra.mxu0 0
    %142 = vmatprep.subr.bf16.mxu0 0
    %143 = vmatpush1.bf16.msra.mxu0 0
    %144 = vmatprep.subr.bf16.mxu0 0
    %145 = vmatpush1.bf16.msra.mxu0 0
    %146 = vmatprep.subr.bf16.mxu0 0
    %147 = vmatpush1.bf16.msra.mxu0 0
    %148 = vmatprep.subr.bf16.mxu0 0
    %149 = vmatpush1.bf16.msra.mxu0 0
    %150 = vmatprep.subr.bf16.mxu0 0
    %151 = vmatpush1.bf16.msra.mxu0 0
    %152 = vmatprep.mubr.bf16.mxu0 0
    %153 = vmatmul.mubr.bf16.gmra.mrb[0].mxu0 %v105
    %v154 = vpop.f32.mrb[0].mxu0
    %v155 = vadd.f32 0.0, %v154
    %v156 = vpop.f32.mrb[0].mxu0
    %v157 = vadd.f32 0.0, %v156
    %v158 = vpop.f32.mrb[0].mxu0
    %v159 = vpop.f32.mrb[0].mxu0
    %160 = vdwg.mxu0
    %161 = vmatprep.subr.bf16.mxu0 %v86
    %162 = vmatpush1.bf16.msra.mxu0 %v85
    %163 = vmatprep.subr.bf16.mxu0 %v90
    %164 = vmatpush1.bf16.msra.mxu0 %v89
    %165 = vmatprep.subr.bf16.mxu0 %v118
    %166 = vmatpush1.bf16.msra.mxu0 %v115
    %167 = vmatprep.subr.bf16.mxu0 0
    %168 = vmatpush1.bf16.msra.mxu0 0
    %169 = vmatprep.subr.bf16.mxu0 0
    %170 = vmatpush1.bf16.msra.mxu0 0
    %171 = vmatprep.subr.bf16.mxu0 0
    %172 = vmatpush1.bf16.msra.mxu0 0
    %173 = vmatprep.subr.bf16.mxu0 0
    %174 = vmatpush1.bf16.msra.mxu0 0
    %175 = vmatprep.subr.bf16.mxu0 0
    %176 = vmatpush1.bf16.msra.mxu0 0
    %177 = vmatprep.subr.bf16.mxu0 0
    %178 = vmatpush1.bf16.msra.mxu0 0
    %179 = vmatprep.subr.bf16.mxu0 0
    %180 = vmatpush1.bf16.msra.mxu0 0
    %181 = vmatprep.subr.bf16.mxu0 0
    %182 = vmatpush1.bf16.msra.mxu0 0
    %183 = vmatprep.subr.bf16.mxu0 0
    %184 = vmatpush1.bf16.msra.mxu0 0
    %185 = vmatprep.subr.bf16.mxu0 0
    %186 = vmatpush1.bf16.msra.mxu0 0
    %187 = vmatprep.subr.bf16.mxu0 0
    %188 = vmatpush1.bf16.msra.mxu0 0
    %189 = vmatprep.subr.bf16.mxu0 0
    %190 = vmatpush1.bf16.msra.mxu0 0
    %191 = vmatprep.subr.bf16.mxu0 0
    %192 = vmatpush1.bf16.msra.mxu0 0
    %193 = vmatprep.mubr.bf16.mxu0 0
    %194 = vmatmul.mubr.bf16.gmra.mrb[0].mxu0 %v105
    %v195 = vpop.f32.mrb[0].mxu0
    %v196 = vadd.f32 0.0, %v195
    %v197 = vpop.f32.mrb[0].mxu0
    %v198 = vadd.f32 0.0, %v197
    %v199 = vpop.f32.mrb[0].mxu0
    %v200 = vpop.f32.mrb[0].mxu0
    %201 = vdwg.mxu0
    %v202 = vld [vmem:[%s2] sm:$0xf]
    %204 = vset.pattern.permute.xlu0 0
    %205 = vperm.xlu0 %204, %v202
    %v206 = vpop.permute.xlu0 %205
    %v208 = vmul.f32 %v155, %v206
    %v209 = vmul.f32 %v157, %v206
    %v210 = vmul.f32 %v196, %v206
    %v211 = vmul.f32 %v198, %v206
    %v212 = vld [vmem:[%s3] sm:$0xf]
    %214 = vset.pattern.permute.xlu0 0
    %215 = vperm.xlu0 %214, %v212
    %v216 = vpop.permute.xlu0 %215
    %v218 = vadd.f32 %v208, %v216
    %v219 = vadd.f32 %v209, %v216
    %v220 = vadd.f32 %v210, %v216
    %v221 = vadd.f32 %v211, %v216
    %v222 = vmax.f32 %v218, 0.0
    %v223 = vmax.f32 %v219, 0.0
    %v224 = vmax.f32 %v220, 0.0
    %v225 = vmax.f32 %v221, 0.0
    %v226 = vld [vmem:[%s4] sm:$0x3]
    %v227 = vpack.c.bf16 %v222, %v222
    %v228 = vpack.c.bf16 %v223, %v223
    %v229 = vpack.c.bf16 %v224, %v224
    %v230 = vpack.c.bf16 %v225, %v225
    %s231 = scalar_lea.vmem %s1, 2
    %v232 = vld [vmem:[%s231] sm:$0x3]
    %s233 = scalar_lea.vmem [#allocation2], 80
    %v234 = vld [vmem:[%s233] sm:$0xff]
    %v235 = vld [vmem:[%s233 + $0x8] sm:$0xff]
    %v236 = vld [vmem:[%s233 + $0x10] sm:$0xff]
    %v237 = vld [vmem:[%s233 + $0x18] sm:$0xff]
    %v238 = vld [vmem:[%s233 + $0x20] sm:$0xff]
    %v239 = vld [vmem:[%s233 + $0x28] sm:$0xff]
    %v240 = vld [vmem:[%s233 + $0x30] sm:$0xff]
    %v241 = vld [vmem:[%s233 + $0x38] sm:$0xff]
    %v242 = vld [vmem:[%s233 + $0x40] sm:$0xff]
    %v243 = vld [vmem:[%s233 + $0x48] sm:$0xff]
    %v254 = vunpack.c.l.b16 %v234
    %v255 = vunpack.c.h.b16 %v234
    %v256 = vunpack.c.l.b16 %v235
    %v257 = vunpack.c.h.b16 %v235
    %v258 = vunpack.c.l.b16 %v236
    %v259 = vunpack.c.h.b16 %v236
    %v260 = vunpack.c.l.b16 %v237
    %v261 = vunpack.c.h.b16 %v237
    %v262 = vunpack.c.l.b16 %v238
    %v263 = vunpack.c.h.b16 %v238
    %v264 = vunpack.c.l.b16 %v239
    %v265 = vunpack.c.h.b16 %v239
    %v266 = vunpack.c.l.b16 %v240
    %v267 = vunpack.c.h.b16 %v240
    %v268 = vunpack.c.l.b16 %v241
    %v269 = vunpack.c.h.b16 %v241
    %v270 = vunpack.c.l.b16 %v242
    %v271 = vunpack.c.h.b16 %v242
    %v272 = vunpack.c.l.b16 %v243
    %v273 = vunpack.c.h.b16 %v243
    %v274 = vpack.c.b16 %v258, %v254
    %v275 = vpack.c.b16 %v259, %v255
    %v276 = vpack.c.b16 %v260, %v256
    %v277 = vpack.c.b16 %v261, %v257
    %v278 = vpack.c.b16 %v266, %v262
    %v279 = vpack.c.b16 %v267, %v263
    %v280 = vpack.c.b16 %v268, %v264
    %v281 = vpack.c.b16 %v269, %v265
    %v282 = vpack.c.b16 %v270, %v270
    %v283 = vpack.c.b16 %v271, %v271
    %v284 = vpack.c.b16 %v272, %v272
    %v285 = vpack.c.b16 %v273, %v273
    %v295 = vsel %vm103, %v232, 0
    %v298 = vsel %vm107, %v282, 0
    %v301 = vsel %vm107, %v283, 0
    %v304 = vsel %vm107, %v284, 0
    %v307 = vsel %vm107, %v285, 0
    %309 = vmatprep.subr.bf16.mxu0 %v275
    %310 = vmatpush1.bf16.msra.mxu0 %v274
    %311 = vmatprep.subr.bf16.mxu0 %v279
    %312 = vmatpush1.bf16.msra.mxu0 %v278
    %313 = vmatprep.subr.bf16.mxu0 %v301
    %314 = vmatpush1.bf16.msra.mxu0 %v298
    %315 = vmatprep.subr.bf16.mxu0 0
    %316 = vmatpush1.bf16.msra.mxu0 0
    %317 = vmatprep.subr.bf16.mxu0 0
    %318 = vmatpush1.bf16.msra.mxu0 0
    %319 = vmatprep.subr.bf16.mxu0 0
    %320 = vmatpush1.bf16.msra.mxu0 0
    %321 = vmatprep.subr.bf16.mxu0 0
    %322 = vmatpush1.bf16.msra.mxu0 0
    %323 = vmatprep.subr.bf16.mxu0 0
    %324 = vmatpush1.bf16.msra.mxu0 0
    %325 = vmatprep.subr.bf16.mxu0 0
    %326 = vmatpush1.bf16.msra.mxu0 0
    %327 = vmatprep.subr.bf16.mxu0 0
    %328 = vmatpush1.bf16.msra.mxu0 0
    %329 = vmatprep.subr.bf16.mxu0 0
    %330 = vmatpush1.bf16.msra.mxu0 0
    %331 = vmatprep.subr.bf16.mxu0 0
    %332 = vmatpush1.bf16.msra.mxu0 0
    %333 = vmatprep.subr.bf16.mxu0 0
    %334 = vmatpush1.bf16.msra.mxu0 0
    %335 = vmatprep.subr.bf16.mxu0 0
    %336 = vmatpush1.bf16.msra.mxu0 0
    %337 = vmatprep.subr.bf16.mxu0 0
    %338 = vmatpush1.bf16.msra.mxu0 0
    %339 = vmatprep.subr.bf16.mxu0 0
    %340 = vmatpush1.bf16.msra.mxu0 0
    %341 = vmatprep.mubr.bf16.mxu0 0
    %342 = vmatmul.mubr.bf16.gmra.mrb[0].mxu0 %v295
    %v343 = vpop.f32.mrb[0].mxu0
    %v344 = vadd.f32 0.0, %v343
    %v345 = vpop.f32.mrb[0].mxu0
    %v346 = vadd.f32 0.0, %v345
    %v347 = vpop.f32.mrb[0].mxu0
    %v348 = vpop.f32.mrb[0].mxu0
    %349 = vdwg.mxu0
    %350 = vmatprep.subr.bf16.mxu0 %v277
    %351 = vmatpush1.bf16.msra.mxu0 %v276
    %352 = vmatprep.subr.bf16.mxu0 %v281
    %353 = vmatpush1.bf16.msra.mxu0 %v280
    %354 = vmatprep.subr.bf16.mxu0 %v307
    %355 = vmatpush1.bf16.msra.mxu0 %v304
    %356 = vmatprep.subr.bf16.mxu0 0
    %357 = vmatpush1.bf16.msra.mxu0 0
    %358 = vmatprep.subr.bf16.mxu0 0
    %359 = vmatpush1.bf16.msra.mxu0 0
    %360 = vmatprep.subr.bf16.mxu0 0
    %361 = vmatpush1.bf16.msra.mxu0 0
    %362 = vmatprep.subr.bf16.mxu0 0
    %363 = vmatpush1.bf16.msra.mxu0 0
    %364 = vmatprep.subr.bf16.mxu0 0
    %365 = vmatpush1.bf16.msra.mxu0 0
    %366 = vmatprep.subr.bf16.mxu0 0
    %367 = vmatpush1.bf16.msra.mxu0 0
    %368 = vmatprep.subr.bf16.mxu0 0
    %369 = vmatpush1.bf16.msra.mxu0 0
    %370 = vmatprep.subr.bf16.mxu0 0
    %371 = vmatpush1.bf16.msra.mxu0 0
    %372 = vmatprep.subr.bf16.mxu0 0
    %373 = vmatpush1.bf16.msra.mxu0 0
    %374 = vmatprep.subr.bf16.mxu0 0
    %375 = vmatpush1.bf16.msra.mxu0 0
    %376 = vmatprep.subr.bf16.mxu0 0
    %377 = vmatpush1.bf16.msra.mxu0 0
    %378 = vmatprep.subr.bf16.mxu0 0
    %379 = vmatpush1.bf16.msra.mxu0 0
    %380 = vmatprep.subr.bf16.mxu0 0
    %381 = vmatpush1.bf16.msra.mxu0 0
    %382 = vmatprep.mubr.bf16.mxu0 0
    %383 = vmatmul.mubr.bf16.gmra.mrb[0].mxu0 %v295
    %v384 = vpop.f32.mrb[0].mxu0
    %v385 = vadd.f32 0.0, %v384
    %v386 = vpop.f32.mrb[0].mxu0
    %v387 = vadd.f32 0.0, %v386
    %v388 = vpop.f32.mrb[0].mxu0
    %v389 = vpop.f32.mrb[0].mxu0
    %390 = vdwg.mxu0
    %s391 = scalar_lea.vmem %s2, 4
    %v392 = vld [vmem:[%s391] sm:$0xf]
    %394 = vset.pattern.permute.xlu0 0
    %395 = vperm.xlu0 %394, %v392
    %v396 = vpop.permute.xlu0 %395
    %v398 = vmul.f32 %v344, %v396
    %v399 = vmul.f32 %v346, %v396
    %v400 = vmul.f32 %v385, %v396
    %v401 = vmul.f32 %v387, %v396
    %s402 = scalar_lea.vmem %s3, 4
    %v403 = vld [vmem:[%s402] sm:$0xf]
    %405 = vset.pattern.permute.xlu0 0
    %406 = vperm.xlu0 %405, %v403
    %v407 = vpop.permute.xlu0 %406
    %v409 = vadd.f32 %v398, %v407
    %v410 = vadd.f32 %v399, %v407
    %v411 = vadd.f32 %v400, %v407
    %v412 = vadd.f32 %v401, %v407
    %v413 = vmax.f32 %v409, 0.0
    %v414 = vmax.f32 %v410, 0.0
    %v415 = vmax.f32 %v411, 0.0
    %v416 = vmax.f32 %v412, 0.0
    %s417 = scalar_lea.vmem %s4, 2
    %v418 = vld [vmem:[%s417] sm:$0x3]
    %v419 = vpack.c.bf16 %v413, %v413
    %v420 = vpack.c.bf16 %v414, %v414
    %v421 = vpack.c.bf16 %v415, %v415
    %v422 = vpack.c.bf16 %v416, %v416
    %vm423 = vcmask 31744
    %v425 = vsel %vm423, %v418, 0
    %vm427 = vcmask 1041408
    %v429 = vsel %vm427, %v419, 0
    %v432 = vsel %vm427, %v420, 0
    %v435 = vsel %vm427, %v421, 0
    %v438 = vsel %vm427, %v422, 0
    %440 = vmatprep.subr.bf16.mxu0 %v432
    %441 = vmatpush1.bf16.msra.mxu0 %v429
    %442 = vmatprep.subr.bf16.mxu0 0
    %443 = vmatpush1.bf16.msra.mxu0 0
    %444 = vmatprep.subr.bf16.mxu0 0
    %445 = vmatpush1.bf16.msra.mxu0 0
    %446 = vmatprep.subr.bf16.mxu0 0
    %447 = vmatpush1.bf16.msra.mxu0 0
    %448 = vmatprep.subr.bf16.mxu0 0
    %449 = vmatpush1.bf16.msra.mxu0 0
    %450 = vmatprep.subr.bf16.mxu0 0
    %451 = vmatpush1.bf16.msra.mxu0 0
    %452 = vmatprep.subr.bf16.mxu0 0
    %453 = vmatpush1.bf16.msra.mxu0 0
    %454 = vmatprep.subr.bf16.mxu0 0
    %455 = vmatpush1.bf16.msra.mxu0 0
    %456 = vmatprep.subr.bf16.mxu0 0
    %457 = vmatpush1.bf16.msra.mxu0 0
    %458 = vmatprep.subr.bf16.mxu0 0
    %459 = vmatpush1.bf16.msra.mxu0 0
    %460 = vmatprep.subr.bf16.mxu0 0
    %461 = vmatpush1.bf16.msra.mxu0 0
    %462 = vmatprep.subr.bf16.mxu0 0
    %463 = vmatpush1.bf16.msra.mxu0 0
    %464 = vmatprep.subr.bf16.mxu0 0
    %465 = vmatpush1.bf16.msra.mxu0 0
    %466 = vmatprep.subr.bf16.mxu0 0
    %467 = vmatpush1.bf16.msra.mxu0 0
    %468 = vmatprep.subr.bf16.mxu0 0
    %469 = vmatpush1.bf16.msra.mxu0 0
    %470 = vmatprep.subr.bf16.mxu0 0
    %471 = vmatpush1.bf16.msra.mxu0 0
    %472 = vmatprep.mubr.bf16.mxu0 0
    %473 = vmatmul.mubr.bf16.gmra.mrb[0].mxu0 %v425
    %v474 = vpop.f32.mrb[0].mxu0
    %v475 = vadd.f32 0.0, %v474
    %v476 = vpop.f32.mrb[0].mxu0
    %v477 = vadd.f32 0.0, %v476
    %v478 = vpop.f32.mrb[0].mxu0
    %v479 = vpop.f32.mrb[0].mxu0
    %480 = vdwg.mxu0
    %481 = vmatprep.subr.bf16.mxu0 %v438
    %482 = vmatpush1.bf16.msra.mxu0 %v435
    %483 = vmatprep.subr.bf16.mxu0 0
    %484 = vmatpush1.bf16.msra.mxu0 0
    %485 = vmatprep.subr.bf16.mxu0 0
    %486 = vmatpush1.bf16.msra.mxu0 0
    %487 = vmatprep.subr.bf16.mxu0 0
    %488 = vmatpush1.bf16.msra.mxu0 0
    %489 = vmatprep.subr.bf16.mxu0 0
    %490 = vmatpush1.bf16.msra.mxu0 0
    %491 = vmatprep.subr.bf16.mxu0 0
    %492 = vmatpush1.bf16.msra.mxu0 0
    %493 = vmatprep.subr.bf16.mxu0 0
    %494 = vmatpush1.bf16.msra.mxu0 0
    %495 = vmatprep.subr.bf16.mxu0 0
    %496 = vmatpush1.bf16.msra.mxu0 0
    %497 = vmatprep.subr.bf16.mxu0 0
    %498 = vmatpush1.bf16.msra.mxu0 0
    %499 = vmatprep.subr.bf16.mxu0 0
    %500 = vmatpush1.bf16.msra.mxu0 0
    %501 = vmatprep.subr.bf16.mxu0 0
    %502 = vmatpush1.bf16.msra.mxu0 0
    %503 = vmatprep.subr.bf16.mxu0 0
    %504 = vmatpush1.bf16.msra.mxu0 0
    %505 = vmatprep.subr.bf16.mxu0 0
    %506 = vmatpush1.bf16.msra.mxu0 0
    %507 = vmatprep.subr.bf16.mxu0 0
    %508 = vmatpush1.bf16.msra.mxu0 0
    %509 = vmatprep.subr.bf16.mxu0 0
    %510 = vmatpush1.bf16.msra.mxu0 0
    %511 = vmatprep.subr.bf16.mxu0 0
    %512 = vmatpush1.bf16.msra.mxu0 0
    %513 = vmatprep.mubr.bf16.mxu0 0
    %514 = vmatmul.mubr.bf16.gmra.mrb[0].mxu0 %v425
    %v515 = vpop.f32.mrb[0].mxu0
    %v516 = vadd.f32 0.0, %v515
    %v517 = vpop.f32.mrb[0].mxu0
    %v518 = vadd.f32 0.0, %v517
    %v519 = vpop.f32.mrb[0].mxu0
    %v520 = vpop.f32.mrb[0].mxu0
    %521 = vdwg.mxu0
    %v523 = vsel %vm423, %v226, 0
    %v526 = vsel %vm427, %v227, 0
    %v529 = vsel %vm427, %v228, 0
    %v532 = vsel %vm427, %v229, 0
    %v535 = vsel %vm427, %v230, 0
    %537 = vmatprep.subr.bf16.mxu0 %v529
    %538 = vmatpush1.bf16.msra.mxu0 %v526
    %539 = vmatprep.subr.bf16.mxu0 0
    %540 = vmatpush1.bf16.msra.mxu0 0
    %541 = vmatprep.subr.bf16.mxu0 0
    %542 = vmatpush1.bf16.msra.mxu0 0
    %543 = vmatprep.subr.bf16.mxu0 0
    %544 = vmatpush1.bf16.msra.mxu0 0
    %545 = vmatprep.subr.bf16.mxu0 0
    %546 = vmatpush1.bf16.msra.mxu0 0
    %547 = vmatprep.subr.bf16.mxu0 0
    %548 = vmatpush1.bf16.msra.mxu0 0
    %549 = vmatprep.subr.bf16.mxu0 0
    %550 = vmatpush1.bf16.msra.mxu0 0
    %551 = vmatprep.subr.bf16.mxu0 0
    %552 = vmatpush1.bf16.msra.mxu0 0
    %553 = vmatprep.subr.bf16.mxu0 0
    %554 = vmatpush1.bf16.msra.mxu0 0
    %555 = vmatprep.subr.bf16.mxu0 0
    %556 = vmatpush1.bf16.msra.mxu0 0
    %557 = vmatprep.subr.bf16.mxu0 0
    %558 = vmatpush1.bf16.msra.mxu0 0
    %559 = vmatprep.subr.bf16.mxu0 0
    %560 = vmatpush1.bf16.msra.mxu0 0
    %561 = vmatprep.subr.bf16.mxu0 0
    %562 = vmatpush1.bf16.msra.mxu0 0
    %563 = vmatprep.subr.bf16.mxu0 0
    %564 = vmatpush1.bf16.msra.mxu0 0
    %565 = vmatprep.subr.bf16.mxu0 0
    %566 = vmatpush1.bf16.msra.mxu0 0
    %567 = vmatprep.subr.bf16.mxu0 0
    %568 = vmatpush1.bf16.msra.mxu0 0
    %569 = vmatprep.mubr.bf16.mxu0 0
    %570 = vmatmul.mubr.bf16.gmra.mrb[0].mxu0 %v523
    %v571 = vpop.f32.mrb[0].mxu0
    %v572 = vadd.f32 %v475, %v571
    %v573 = vpop.f32.mrb[0].mxu0
    %v574 = vadd.f32 %v477, %v573
    %v575 = vpop.f32.mrb[0].mxu0
    %v576 = vpop.f32.mrb[0].mxu0
    %577 = vdwg.mxu0
    %578 = vmatprep.subr.bf16.mxu0 %v535
    %579 = vmatpush1.bf16.msra.mxu0 %v532
    %580 = vmatprep.subr.bf16.mxu0 0
    %581 = vmatpush1.bf16.msra.mxu0 0
    %582 = vmatprep.subr.bf16.mxu0 0
    %583 = vmatpush1.bf16.msra.mxu0 0
    %584 = vmatprep.subr.bf16.mxu0 0
    %585 = vmatpush1.bf16.msra.mxu0 0
    %586 = vmatprep.subr.bf16.mxu0 0
    %587 = vmatpush1.bf16.msra.mxu0 0
    %588 = vmatprep.subr.bf16.mxu0 0
    %589 = vmatpush1.bf16.msra.mxu0 0
    %590 = vmatprep.subr.bf16.mxu0 0
    %591 = vmatpush1.bf16.msra.mxu0 0
    %592 = vmatprep.subr.bf16.mxu0 0
    %593 = vmatpush1.bf16.msra.mxu0 0
    %594 = vmatprep.subr.bf16.mxu0 0
    %595 = vmatpush1.bf16.msra.mxu0 0
    %596 = vmatprep.subr.bf16.mxu0 0
    %597 = vmatpush1.bf16.msra.mxu0 0
    %598 = vmatprep.subr.bf16.mxu0 0
    %599 = vmatpush1.bf16.msra.mxu0 0
    %600 = vmatprep.subr.bf16.mxu0 0
    %601 = vmatpush1.bf16.msra.mxu0 0
    %602 = vmatprep.subr.bf16.mxu0 0
    %603 = vmatpush1.bf16.msra.mxu0 0
    %604 = vmatprep.subr.bf16.mxu0 0
    %605 = vmatpush1.bf16.msra.mxu0 0
    %606 = vmatprep.subr.bf16.mxu0 0
    %607 = vmatpush1.bf16.msra.mxu0 0
    %608 = vmatprep.subr.bf16.mxu0 0
    %609 = vmatpush1.bf16.msra.mxu0 0
    %610 = vmatprep.mubr.bf16.mxu0 0
    %611 = vmatmul.mubr.bf16.gmra.mrb[0].mxu0 %v523
    %v612 = vpop.f32.mrb[0].mxu0
    %v613 = vadd.f32 %v516, %v612
    %v614 = vpop.f32.mrb[0].mxu0
    %v615 = vadd.f32 %v518, %v614
    %v616 = vpop.f32.mrb[0].mxu0
    %v617 = vpop.f32.mrb[0].mxu0
    %618 = vdwg.mxu0
    %s619 = scalar_lea.vmem %s1, 4
    %v620 = vld [vmem:[%s619] sm:$0x3]
    %s621 = scalar_lea.vmem [#allocation2], 160
    %v622 = vld [vmem:[%s621] sm:$0xff]
    %v623 = vld [vmem:[%s621 + $0x8] sm:$0xff]
    %v624 = vld [vmem:[%s621 + $0x10] sm:$0xff]
    %v625 = vld [vmem:[%s621 + $0x18] sm:$0xff]
    %v626 = vld [vmem:[%s621 + $0x20] sm:$0xff]
    %v627 = vld [vmem:[%s621 + $0x28] sm:$0xff]
    %v628 = vld [vmem:[%s621 + $0x30] sm:$0xff]
    %v629 = vld [vmem:[%s621 + $0x38] sm:$0xff]
    %v630 = vld [vmem:[%s621 + $0x40] sm:$0xff]
    %v631 = vld [vmem:[%s621 + $0x48] sm:$0xff]
    %v642 = vunpack.c.l.b16 %v622
    %v643 = vunpack.c.h.b16 %v622
    %v644 = vunpack.c.l.b16 %v623
    %v645 = vunpack.c.h.b16 %v623
    %v646 = vunpack.c.l.b16 %v624
    %v647 = vunpack.c.h.b16 %v624
    %v648 = vunpack.c.l.b16 %v625
    %v649 = vunpack.c.h.b16 %v625
    %v650 = vunpack.c.l.b16 %v626
    %v651 = vunpack.c.h.b16 %v626
    %v652 = vunpack.c.l.b16 %v627
    %v653 = vunpack.c.h.b16 %v627
    %v654 = vunpack.c.l.b16 %v628
    %v655 = vunpack.c.h.b16 %v628
    %v656 = vunpack.c.l.b16 %v629
    %v657 = vunpack.c.h.b16 %v629
    %v658 = vunpack.c.l.b16 %v630
    %v659 = vunpack.c.h.b16 %v630
    %v660 = vunpack.c.l.b16 %v631
    %v661 = vunpack.c.h.b16 %v631
    %v662 = vpack.c.b16 %v646, %v642
    %v663 = vpack.c.b16 %v647, %v643
    %v664 = vpack.c.b16 %v648, %v644
    %v665 = vpack.c.b16 %v649, %v645
    %v666 = vpack.c.b16 %v654, %v650
    %v667 = vpack.c.b16 %v655, %v651
    %v668 = vpack.c.b16 %v656, %v652
    %v669 = vpack.c.b16 %v657, %v653
    %v670 = vpack.c.b16 %v658, %v658
    %v671 = vpack.c.b16 %v659, %v659
    %v672 = vpack.c.b16 %v660, %v660
    %v673 = vpack.c.b16 %v661, %v661
    %v683 = vsel %vm103, %v620, 0
    %v686 = vsel %vm107, %v670, 0
    %v689 = vsel %vm107, %v671, 0
    %v692 = vsel %vm107, %v672, 0
    %v695 = vsel %vm107, %v673, 0
    %697 = vmatprep.subr.bf16.mxu0 %v663
    %698 = vmatpush1.bf16.msra.mxu0 %v662
    %699 = vmatprep.subr.bf16.mxu0 %v667
    %700 = vmatpush1.bf16.msra.mxu0 %v666
    %701 = vmatprep.subr.bf16.mxu0 %v689
    %702 = vmatpush1.bf16.msra.mxu0 %v686
    %703 = vmatprep.subr.bf16.mxu0 0
    %704 = vmatpush1.bf16.msra.mxu0 0
    %705 = vmatprep.subr.bf16.mxu0 0
    %706 = vmatpush1.bf16.msra.mxu0 0
    %707 = vmatprep.subr.bf16.mxu0 0
    %708 = vmatpush1.bf16.msra.mxu0 0
    %709 = vmatprep.subr.bf16.mxu0 0
    %710 = vmatpush1.bf16.msra.mxu0 0
    %711 = vmatprep.subr.bf16.mxu0 0
    %712 = vmatpush1.bf16.msra.mxu0 0
    %713 = vmatprep.subr.bf16.mxu0 0
    %714 = vmatpush1.bf16.msra.mxu0 0
    %715 = vmatprep.subr.bf16.mxu0 0
    %716 = vmatpush1.bf16.msra.mxu0 0
    %717 = vmatprep.subr.bf16.mxu0 0
    %718 = vmatpush1.bf16.msra.mxu0 0
    %719 = vmatprep.subr.bf16.mxu0 0
    %720 = vmatpush1.bf16.msra.mxu0 0
    %721 = vmatprep.subr.bf16.mxu0 0
    %722 = vmatpush1.bf16.msra.mxu0 0
    %723 = vmatprep.subr.bf16.mxu0 0
    %724 = vmatpush1.bf16.msra.mxu0 0
    %725 = vmatprep.subr.bf16.mxu0 0
    %726 = vmatpush1.bf16.msra.mxu0 0
    %727 = vmatprep.subr.bf16.mxu0 0
    %728 = vmatpush1.bf16.msra.mxu0 0
    %729 = vmatprep.mubr.bf16.mxu0 0
    %730 = vmatmul.mubr.bf16.gmra.mrb[0].mxu0 %v683
    %v731 = vpop.f32.mrb[0].mxu0
    %v732 = vadd.f32 0.0, %v731
    %v733 = vpop.f32.mrb[0].mxu0
    %v734 = vadd.f32 0.0, %v733
    %v735 = vpop.f32.mrb[0].mxu0
    %v736 = vpop.f32.mrb[0].mxu0
    %737 = vdwg.mxu0
    %738 = vmatprep.subr.bf16.mxu0 %v665
    %739 = vmatpush1.bf16.msra.mxu0 %v664
    %740 = vmatprep.subr.bf16.mxu0 %v669
    %741 = vmatpush1.bf16.msra.mxu0 %v668
    %742 = vmatprep.subr.bf16.mxu0 %v695
    %743 = vmatpush1.bf16.msra.mxu0 %v692
    %744 = vmatprep.subr.bf16.mxu0 0
    %745 = vmatpush1.bf16.msra.mxu0 0
    %746 = vmatprep.subr.bf16.mxu0 0
    %747 = vmatpush1.bf16.msra.mxu0 0
    %748 = vmatprep.subr.bf16.mxu0 0
    %749 = vmatpush1.bf16.msra.mxu0 0
    %750 = vmatprep.subr.bf16.mxu0 0
    %751 = vmatpush1.bf16.msra.mxu0 0
    %752 = vmatprep.subr.bf16.mxu0 0
    %753 = vmatpush1.bf16.msra.mxu0 0
    %754 = vmatprep.subr.bf16.mxu0 0
    %755 = vmatpush1.bf16.msra.mxu0 0
    %756 = vmatprep.subr.bf16.mxu0 0
    %757 = vmatpush1.bf16.msra.mxu0 0
    %758 = vmatprep.subr.bf16.mxu0 0
    %759 = vmatpush1.bf16.msra.mxu0 0
    %760 = vmatprep.subr.bf16.mxu0 0
    %761 = vmatpush1.bf16.msra.mxu0 0
    %762 = vmatprep.subr.bf16.mxu0 0
    %763 = vmatpush1.bf16.msra.mxu0 0
    %764 = vmatprep.subr.bf16.mxu0 0
    %765 = vmatpush1.bf16.msra.mxu0 0
    %766 = vmatprep.subr.bf16.mxu0 0
    %767 = vmatpush1.bf16.msra.mxu0 0
    %768 = vmatprep.subr.bf16.mxu0 0
    %769 = vmatpush1.bf16.msra.mxu0 0
    %770 = vmatprep.mubr.bf16.mxu0 0
    %771 = vmatmul.mubr.bf16.gmra.mrb[0].mxu0 %v683
    %v772 = vpop.f32.mrb[0].mxu0
    %v773 = vadd.f32 0.0, %v772
    %v774 = vpop.f32.mrb[0].mxu0
    %v775 = vadd.f32 0.0, %v774
    %v776 = vpop.f32.mrb[0].mxu0
    %v777 = vpop.f32.mrb[0].mxu0
    %778 = vdwg.mxu0
    %s779 = scalar_lea.vmem %s2, 8
    %v780 = vld [vmem:[%s779] sm:$0xf]
    %782 = vset.pattern.permute.xlu0 0
    %783 = vperm.xlu0 %782, %v780
    %v784 = vpop.permute.xlu0 %783
    %v786 = vmul.f32 %v732, %v784
    %v787 = vmul.f32 %v734, %v784
    %v788 = vmul.f32 %v773, %v784
    %v789 = vmul.f32 %v775, %v784
    %s790 = scalar_lea.vmem %s3, 8
    %v791 = vld [vmem:[%s790] sm:$0xf]
    %793 = vset.pattern.permute.xlu0 0
    %794 = vperm.xlu0 %793, %v791
    %v795 = vpop.permute.xlu0 %794
    %v797 = vadd.f32 %v786, %v795
    %v798 = vadd.f32 %v787, %v795
    %v799 = vadd.f32 %v788, %v795
    %v800 = vadd.f32 %v789, %v795
    %v801 = vmax.f32 %v797, 0.0
    %v802 = vmax.f32 %v798, 0.0
    %v803 = vmax.f32 %v799, 0.0
    %v804 = vmax.f32 %v800, 0.0
    %s805 = scalar_lea.vmem %s4, 4
    %v806 = vld [vmem:[%s805] sm:$0x3]
    %v807 = vpack.c.bf16 %v801, %v801
    %v808 = vpack.c.bf16 %v802, %v802
    %v809 = vpack.c.bf16 %v803, %v803
    %v810 = vpack.c.bf16 %v804, %v804
    %v812 = vsel %vm423, %v806, 0
    %v815 = vsel %vm427, %v807, 0
    %v818 = vsel %vm427, %v808, 0
    %v821 = vsel %vm427, %v809, 0
    %v824 = vsel %vm427, %v810, 0
    %826 = vmatprep.subr.bf16.mxu0 %v818
    %827 = vmatpush1.bf16.msra.mxu0 %v815
    %828 = vmatprep.subr.bf16.mxu0 0
    %829 = vmatpush1.bf16.msra.mxu0 0
    %830 = vmatprep.subr.bf16.mxu0 0
    %831 = vmatpush1.bf16.msra.mxu0 0
    %832 = vmatprep.subr.bf16.mxu0 0
    %833 = vmatpush1.bf16.msra.mxu0 0
    %834 = vmatprep.subr.bf16.mxu0 0
    %835 = vmatpush1.bf16.msra.mxu0 0
    %836 = vmatprep.subr.bf16.mxu0 0
    %837 = vmatpush1.bf16.msra.mxu0 0
    %838 = vmatprep.subr.bf16.mxu0 0
    %839 = vmatpush1.bf16.msra.mxu0 0
    %840 = vmatprep.subr.bf16.mxu0 0
    %841 = vmatpush1.bf16.msra.mxu0 0
    %842 = vmatprep.subr.bf16.mxu0 0
    %843 = vmatpush1.bf16.msra.mxu0 0
    %844 = vmatprep.subr.bf16.mxu0 0
    %845 = vmatpush1.bf16.msra.mxu0 0
    %846 = vmatprep.subr.bf16.mxu0 0
    %847 = vmatpush1.bf16.msra.mxu0 0
    %848 = vmatprep.subr.bf16.mxu0 0
    %849 = vmatpush1.bf16.msra.mxu0 0
    %850 = vmatprep.subr.bf16.mxu0 0
    %851 = vmatpush1.bf16.msra.mxu0 0
    %852 = vmatprep.subr.bf16.mxu0 0
    %853 = vmatpush1.bf16.msra.mxu0 0
    %854 = vmatprep.subr.bf16.mxu0 0
    %855 = vmatpush1.bf16.msra.mxu0 0
    %856 = vmatprep.subr.bf16.mxu0 0
    %857 = vmatpush1.bf16.msra.mxu0 0
    %858 = vmatprep.mubr.bf16.mxu0 0
    %859 = vmatmul.mubr.bf16.gmra.mrb[0].mxu0 %v812
    %v860 = vpop.f32.mrb[0].mxu0
    %v861 = vadd.f32 0.0, %v860
    %v862 = vpop.f32.mrb[0].mxu0
    %v863 = vadd.f32 0.0, %v862
    %v864 = vpop.f32.mrb[0].mxu0
    %v865 = vpop.f32.mrb[0].mxu0
    %866 = vdwg.mxu0
    %867 = vmatprep.subr.bf16.mxu0 %v824
    %868 = vmatpush1.bf16.msra.mxu0 %v821
    %869 = vmatprep.subr.bf16.mxu0 0
    %870 = vmatpush1.bf16.msra.mxu0 0
    %871 = vmatprep.subr.bf16.mxu0 0
    %872 = vmatpush1.bf16.msra.mxu0 0
    %873 = vmatprep.subr.bf16.mxu0 0
    %874 = vmatpush1.bf16.msra.mxu0 0
    %875 = vmatprep.subr.bf16.mxu0 0
    %876 = vmatpush1.bf16.msra.mxu0 0
    %877 = vmatprep.subr.bf16.mxu0 0
    %878 = vmatpush1.bf16.msra.mxu0 0
    %879 = vmatprep.subr.bf16.mxu0 0
    %880 = vmatpush1.bf16.msra.mxu0 0
    %881 = vmatprep.subr.bf16.mxu0 0
    %882 = vmatpush1.bf16.msra.mxu0 0
    %883 = vmatprep.subr.bf16.mxu0 0
    %884 = vmatpush1.bf16.msra.mxu0 0
    %885 = vmatprep.subr.bf16.mxu0 0
    %886 = vmatpush1.bf16.msra.mxu0 0
    %887 = vmatprep.subr.bf16.mxu0 0
    %888 = vmatpush1.bf16.msra.mxu0 0
    %889 = vmatprep.subr.bf16.mxu0 0
    %890 = vmatpush1.bf16.msra.mxu0 0
    %891 = vmatprep.subr.bf16.mxu0 0
    %892 = vmatpush1.bf16.msra.mxu0 0
    %893 = vmatprep.subr.bf16.mxu0 0
    %894 = vmatpush1.bf16.msra.mxu0 0
    %895 = vmatprep.subr.bf16.mxu0 0
    %896 = vmatpush1.bf16.msra.mxu0 0
    %897 = vmatprep.subr.bf16.mxu0 0
    %898 = vmatpush1.bf16.msra.mxu0 0
    %899 = vmatprep.mubr.bf16.mxu0 0
    %900 = vmatmul.mubr.bf16.gmra.mrb[0].mxu0 %v812
    %v901 = vpop.f32.mrb[0].mxu0
    %v902 = vadd.f32 0.0, %v901
    %v903 = vpop.f32.mrb[0].mxu0
    %v904 = vadd.f32 0.0, %v903
    %v905 = vpop.f32.mrb[0].mxu0
    %v906 = vpop.f32.mrb[0].mxu0
    %907 = vdwg.mxu0
    %v908 = vadd.f32 %v572, %v861
    %v909 = vadd.f32 %v574, %v863
    %v910 = vadd.f32 %v613, %v902
    %v911 = vadd.f32 %v615, %v904
    %s912 = scalar_lea.vmem %s1, 6
    %v913 = vld [vmem:[%s912] sm:$0x3]
    %s914 = scalar_lea.vmem [#allocation2], 240
    %v915 = vld [vmem:[%s914] sm:$0xff]
    %v916 = vld [vmem:[%s914 + $0x8] sm:$0xff]
    %v917 = vld [vmem:[%s914 + $0x10] sm:$0xff]
    %v918 = vld [vmem:[%s914 + $0x18] sm:$0xff]
    %v919 = vld [vmem:[%s914 + $0x20] sm:$0xff]
    %v920 = vld [vmem:[%s914 + $0x28] sm:$0xff]
    %v921 = vld [vmem:[%s914 + $0x30] sm:$0xff]
    %v922 = vld [vmem:[%s914 + $0x38] sm:$0xff]
    %v923 = vld [vmem:[%s914 + $0x40] sm:$0xff]
    %v924 = vld [vmem:[%s914 + $0x48] sm:$0xff]
    %v935 = vunpack.c.l.b16 %v915
    %v936 = vunpack.c.h.b16 %v915
    %v937 = vunpack.c.l.b16 %v916
    %v938 = vunpack.c.h.b16 %v916
    %v939 = vunpack.c.l.b16 %v917
    %v940 = vunpack.c.h.b16 %v917
    %v941 = vunpack.c.l.b16 %v918
    %v942 = vunpack.c.h.b16 %v918
    %v943 = vunpack.c.l.b16 %v919
    %v944 = vunpack.c.h.b16 %v919
    %v945 = vunpack.c.l.b16 %v920
    %v946 = vunpack.c.h.b16 %v920
    %v947 = vunpack.c.l.b16 %v921
    %v948 = vunpack.c.h.b16 %v921
    %v949 = vunpack.c.l.b16 %v922
    %v950 = vunpack.c.h.b16 %v922
    %v951 = vunpack.c.l.b16 %v923
    %v952 = vunpack.c.h.b16 %v923
    %v953 = vunpack.c.l.b16 %v924
    %v954 = vunpack.c.h.b16 %v924
    %v955 = vpack.c.b16 %v939, %v935
    %v956 = vpack.c.b16 %v940, %v936
    %v957 = vpack.c.b16 %v941, %v937
    %v958 = vpack.c.b16 %v942, %v938
    %v959 = vpack.c.b16 %v947, %v943
    %v960 = vpack.c.b16 %v948, %v944
    %v961 = vpack.c.b16 %v949, %v945
    %v962 = vpack.c.b16 %v950, %v946
    %v963 = vpack.c.b16 %v951, %v951
    %v964 = vpack.c.b16 %v952, %v952
    %v965 = vpack.c.b16 %v953, %v953
    %v966 = vpack.c.b16 %v954, %v954
    %v976 = vsel %vm103, %v913, 0
    %v979 = vsel %vm107, %v963, 0
    %v982 = vsel %vm107, %v964, 0
    %v985 = vsel %vm107, %v965, 0
    %v988 = vsel %vm107, %v966, 0
    %990 = vmatprep.subr.bf16.mxu0 %v956
    %991 = vmatpush1.bf16.msra.mxu0 %v955
    %992 = vmatprep.subr.bf16.mxu0 %v960
    %993 = vmatpush1.bf16.msra.mxu0 %v959
    %994 = vmatprep.subr.bf16.mxu0 %v982
    %995 = vmatpush1.bf16.msra.mxu0 %v979
    %996 = vmatprep.subr.bf16.mxu0 0
    %997 = vmatpush1.bf16.msra.mxu0 0
    %998 = vmatprep.subr.bf16.mxu0 0
    %999 = vmatpush1.bf16.msra.mxu0 0
    %1000 = vmatprep.subr.bf16.mxu0 0
    %1001 = vmatpush1.bf16.msra.mxu0 0
    %1002 = vmatprep.subr.bf16.mxu0 0
    %1003 = vmatpush1.bf16.msra.mxu0 0
    %1004 = vmatprep.subr.bf16.mxu0 0
    %1005 = vmatpush1.bf16.msra.mxu0 0
    %1006 = vmatprep.subr.bf16.mxu0 0
    %1007 = vmatpush1.bf16.msra.mxu0 0
    %1008 = vmatprep.subr.bf16.mxu0 0
    %1009 = vmatpush1.bf16.msra.mxu0 0
    %1010 = vmatprep.subr.bf16.mxu0 0
    %1011 = vmatpush1.bf16.msra.mxu0 0
    %1012 = vmatprep.subr.bf16.mxu0 0
    %1013 = vmatpush1.bf16.msra.mxu0 0
    %1014 = vmatprep.subr.bf16.mxu0 0
    %1015 = vmatpush1.bf16.msra.mxu0 0
    %1016 = vmatprep.subr.bf16.mxu0 0
    %1017 = vmatpush1.bf16.msra.mxu0 0
    %1018 = vmatprep.subr.bf16.mxu0 0
    %1019 = vmatpush1.bf16.msra.mxu0 0
    %1020 = vmatprep.subr.bf16.mxu0 0
    %1021 = vmatpush1.bf16.msra.mxu0 0
    %1022 = vmatprep.mubr.bf16.mxu0 0
    %1023 = vmatmul.mubr.bf16.gmra.mrb[0].mxu0 %v976
    %v1024 = vpop.f32.mrb[0].mxu0
    %v1025 = vadd.f32 0.0, %v1024
    %v1026 = vpop.f32.mrb[0].mxu0
    %v1027 = vadd.f32 0.0, %v1026
    %v1028 = vpop.f32.mrb[0].mxu0
    %v1029 = vpop.f32.mrb[0].mxu0
    %1030 = vdwg.mxu0
    %1031 = vmatprep.subr.bf16.mxu0 %v958
    %1032 = vmatpush1.bf16.msra.mxu0 %v957
    %1033 = vmatprep.subr.bf16.mxu0 %v962
    %1034 = vmatpush1.bf16.msra.mxu0 %v961
    %1035 = vmatprep.subr.bf16.mxu0 %v988
    %1036 = vmatpush1.bf16.msra.mxu0 %v985
    %1037 = vmatprep.subr.bf16.mxu0 0
    %1038 = vmatpush1.bf16.msra.mxu0 0
    %1039 = vmatprep.subr.bf16.mxu0 0
    %1040 = vmatpush1.bf16.msra.mxu0 0
    %1041 = vmatprep.subr.bf16.mxu0 0
    %1042 = vmatpush1.bf16.msra.mxu0 0
    %1043 = vmatprep.subr.bf16.mxu0 0
    %1044 = vmatpush1.bf16.msra.mxu0 0
    %1045 = vmatprep.subr.bf16.mxu0 0
    %1046 = vmatpush1.bf16.msra.mxu0 0
    %1047 = vmatprep.subr.bf16.mxu0 0
    %1048 = vmatpush1.bf16.msra.mxu0 0
    %1049 = vmatprep.subr.bf16.mxu0 0
    %1050 = vmatpush1.bf16.msra.mxu0 0
    %1051 = vmatprep.subr.bf16.mxu0 0
    %1052 = vmatpush1.bf16.msra.mxu0 0
    %1053 = vmatprep.subr.bf16.mxu0 0
    %1054 = vmatpush1.bf16.msra.mxu0 0
    %1055 = vmatprep.subr.bf16.mxu0 0
    %1056 = vmatpush1.bf16.msra.mxu0 0
    %1057 = vmatprep.subr.bf16.mxu0 0
    %1058 = vmatpush1.bf16.msra.mxu0 0
    %1059 = vmatprep.subr.bf16.mxu0 0
    %1060 = vmatpush1.bf16.msra.mxu0 0
    %1061 = vmatprep.subr.bf16.mxu0 0
    %1062 = vmatpush1.bf16.msra.mxu0 0
    %1063 = vmatprep.mubr.bf16.mxu0 0
    %1064 = vmatmul.mubr.bf16.gmra.mrb[0].mxu0 %v976
    %v1065 = vpop.f32.mrb[0].mxu0
    %v1066 = vadd.f32 0.0, %v1065
    %v1067 = vpop.f32.mrb[0].mxu0
    %v1068 = vadd.f32 0.0, %v1067
    %v1069 = vpop.f32.mrb[0].mxu0
    %v1070 = vpop.f32.mrb[0].mxu0
    %1071 = vdwg.mxu0
    %s1072 = scalar_lea.vmem %s2, 12
    %v1073 = vld [vmem:[%s1072] sm:$0xf]
    %1075 = vset.pattern.permute.xlu0 0
    %1076 = vperm.xlu0 %1075, %v1073
    %v1077 = vpop.permute.xlu0 %1076
    %v1079 = vmul.f32 %v1025, %v1077
    %v1080 = vmul.f32 %v1027, %v1077
    %v1081 = vmul.f32 %v1066, %v1077
    %v1082 = vmul.f32 %v1068, %v1077
    %s1083 = scalar_lea.vmem %s3, 12
    %v1084 = vld [vmem:[%s1083] sm:$0xf]
    %1086 = vset.pattern.permute.xlu0 0
    %1087 = vperm.xlu0 %1086, %v1084
    %v1088 = vpop.permute.xlu0 %1087
    %v1090 = vadd.f32 %v1079, %v1088
    %v1091 = vadd.f32 %v1080, %v1088
    %v1092 = vadd.f32 %v1081, %v1088
    %v1093 = vadd.f32 %v1082, %v1088
    %v1094 = vmax.f32 %v1090, 0.0
    %v1095 = vmax.f32 %v1091, 0.0
    %v1096 = vmax.f32 %v1092, 0.0
    %v1097 = vmax.f32 %v1093, 0.0
    %s1098 = scalar_lea.vmem %s4, 6
    %v1099 = vld [vmem:[%s1098] sm:$0x3]
    %v1100 = vpack.c.bf16 %v1094, %v1094
    %v1101 = vpack.c.bf16 %v1095, %v1095
    %v1102 = vpack.c.bf16 %v1096, %v1096
    %v1103 = vpack.c.bf16 %v1097, %v1097
    %v1105 = vsel %vm423, %v1099, 0
    %v1108 = vsel %vm427, %v1100, 0
    %v1111 = vsel %vm427, %v1101, 0
    %v1114 = vsel %vm427, %v1102, 0
    %v1117 = vsel %vm427, %v1103, 0
    %1119 = vmatprep.subr.bf16.mxu0 %v1111
    %1120 = vmatpush1.bf16.msra.mxu0 %v1108
    %1121 = vmatprep.subr.bf16.mxu0 0
    %1122 = vmatpush1.bf16.msra.mxu0 0
    %1123 = vmatprep.subr.bf16.mxu0 0
    %1124 = vmatpush1.bf16.msra.mxu0 0
    %1125 = vmatprep.subr.bf16.mxu0 0
    %1126 = vmatpush1.bf16.msra.mxu0 0
    %1127 = vmatprep.subr.bf16.mxu0 0
    %1128 = vmatpush1.bf16.msra.mxu0 0
    %1129 = vmatprep.subr.bf16.mxu0 0
    %1130 = vmatpush1.bf16.msra.mxu0 0
    %1131 = vmatprep.subr.bf16.mxu0 0
    %1132 = vmatpush1.bf16.msra.mxu0 0
    %1133 = vmatprep.subr.bf16.mxu0 0
    %1134 = vmatpush1.bf16.msra.mxu0 0
    %1135 = vmatprep.subr.bf16.mxu0 0
    %1136 = vmatpush1.bf16.msra.mxu0 0
    %1137 = vmatprep.subr.bf16.mxu0 0
    %1138 = vmatpush1.bf16.msra.mxu0 0
    %1139 = vmatprep.subr.bf16.mxu0 0
    %1140 = vmatpush1.bf16.msra.mxu0 0
    %1141 = vmatprep.subr.bf16.mxu0 0
    %1142 = vmatpush1.bf16.msra.mxu0 0
    %1143 = vmatprep.subr.bf16.mxu0 0
    %1144 = vmatpush1.bf16.msra.mxu0 0
    %1145 = vmatprep.subr.bf16.mxu0 0
    %1146 = vmatpush1.bf16.msra.mxu0 0
    %1147 = vmatprep.subr.bf16.mxu0 0
    %1148 = vmatpush1.bf16.msra.mxu0 0
    %1149 = vmatprep.subr.bf16.mxu0 0
    %1150 = vmatpush1.bf16.msra.mxu0 0
    %1151 = vmatprep.mubr.bf16.mxu0 0
    %1152 = vmatmul.mubr.bf16.gmra.mrb[0].mxu0 %v1105
    %v1153 = vpop.f32.mrb[0].mxu0
    %v1154 = vadd.f32 0.0, %v1153
    %v1155 = vpop.f32.mrb[0].mxu0
    %v1156 = vadd.f32 0.0, %v1155
    %v1157 = vpop.f32.mrb[0].mxu0
    %v1158 = vpop.f32.mrb[0].mxu0
    %1159 = vdwg.mxu0
    %1160 = vmatprep.subr.bf16.mxu0 %v1117
    %1161 = vmatpush1.bf16.msra.mxu0 %v1114
    %1162 = vmatprep.subr.bf16.mxu0 0
    %1163 = vmatpush1.bf16.msra.mxu0 0
    %1164 = vmatprep.subr.bf16.mxu0 0
    %1165 = vmatpush1.bf16.msra.mxu0 0
    %1166 = vmatprep.subr.bf16.mxu0 0
    %1167 = vmatpush1.bf16.msra.mxu0 0
    %1168 = vmatprep.subr.bf16.mxu0 0
    %1169 = vmatpush1.bf16.msra.mxu0 0
    %1170 = vmatprep.subr.bf16.mxu0 0
    %1171 = vmatpush1.bf16.msra.mxu0 0
    %1172 = vmatprep.subr.bf16.mxu0 0
    %1173 = vmatpush1.bf16.msra.mxu0 0
    %1174 = vmatprep.subr.bf16.mxu0 0
    %1175 = vmatpush1.bf16.msra.mxu0 0
    %1176 = vmatprep.subr.bf16.mxu0 0
    %1177 = vmatpush1.bf16.msra.mxu0 0
    %1178 = vmatprep.subr.bf16.mxu0 0
    %1179 = vmatpush1.bf16.msra.mxu0 0
    %1180 = vmatprep.subr.bf16.mxu0 0
    %1181 = vmatpush1.bf16.msra.mxu0 0
    %1182 = vmatprep.subr.bf16.mxu0 0
    %1183 = vmatpush1.bf16.msra.mxu0 0
    %1184 = vmatprep.subr.bf16.mxu0 0
    %1185 = vmatpush1.bf16.msra.mxu0 0
    %1186 = vmatprep.subr.bf16.mxu0 0
    %1187 = vmatpush1.bf16.msra.mxu0 0
    %1188 = vmatprep.subr.bf16.mxu0 0
    %1189 = vmatpush1.bf16.msra.mxu0 0
    %1190 = vmatprep.subr.bf16.mxu0 0
    %1191 = vmatpush1.bf16.msra.mxu0 0
    %1192 = vmatprep.mubr.bf16.mxu0 0
    %1193 = vmatmul.mubr.bf16.gmra.mrb[0].mxu0 %v1105
    %v1194 = vpop.f32.mrb[0].mxu0
    %v1195 = vadd.f32 0.0, %v1194
    %v1196 = vpop.f32.mrb[0].mxu0
    %v1197 = vadd.f32 0.0, %v1196
    %v1198 = vpop.f32.mrb[0].mxu0
    %v1199 = vpop.f32.mrb[0].mxu0
    %1200 = vdwg.mxu0
    %v1201 = vadd.f32 %v908, %v1154
    %v1202 = vadd.f32 %v909, %v1156
    %v1203 = vadd.f32 %v910, %v1195
    %v1204 = vadd.f32 %v911, %v1197
    %v1205 = vld [vmem:[%s5] sm:$0xf]
    %1207 = vset.pattern.permute.xlu0 0
    %1208 = vperm.xlu0 %1207, %v1205
    %v1209 = vpop.permute.xlu0 %1208
    %v1211 = vmul.f32 %v1201, %v1209
    %v1212 = vmul.f32 %v1202, %v1209
    %v1213 = vmul.f32 %v1203, %v1209
    %v1214 = vmul.f32 %v1204, %v1209
    %v1215 = vld [vmem:[%s6] sm:$0xf]
    %1217 = vset.pattern.permute.xlu0 0
    %1218 = vperm.xlu0 %1217, %v1215
    %v1219 = vpop.permute.xlu0 %1218
    %v1221 = vadd.f32 %v1211, %v1219
    %v1222 = vadd.f32 %v1212, %v1219
    %v1223 = vadd.f32 %v1213, %v1219
    %v1224 = vadd.f32 %v1214, %v1219
    %v1225 = vmax.f32 %v1221, 0.0
    %v1226 = vmax.f32 %v1222, 0.0
    %v1227 = vmax.f32 %v1223, 0.0
    %v1228 = vmax.f32 %v1224, 0.0
    %v1233 = vcombine.low %v1225, %v1226
    %v1234 = vcombine.low %v1227, %v1228
    %1237 = vst [vmem:[#allocation5] sm:$0xff] %v1233
    %1238 = vst [vmem:[#allocation5 + $0x8] sm:$0xff] %v1234
    // Predicated region
    $region34: #{tpu_custom_call.1} parent=1 // pred_check
      _
    $region35: #{tpu_custom_call.1} parent=1 // pred_check_branch
      %1240 = sbr.rel (0) target = $region37
    $region36: #{tpu_custom_call.1} parent=1 // pred_region
      %s1242 = ssub.s32 256, 256
      %1243 = vsyncadd [#allocation4], %s1242
      %s1245 = sshll.u32 [#allocation5], 4
      %s1246 = int_to_ptr.vmem [resolvable:$true] %s1245
      %1248 = dma.vmem_to_hbm [thread:$0]  %s1246, 256, %s7, [#allocation4]
    $region37: #{tpu_custom_call.1} parent=1 // pred_fallthru
      _
    // Predicated region
    $region38: #{tpu_custom_call.1} parent=1 // pred_check
      _
    $region39: #{tpu_custom_call.1} parent=1 // pred_check_branch
      %1250 = sbr.rel (0) target = $region41
    $region40: #{tpu_custom_call.1} parent=1 // pred_region
      %1251 = dma.done [#allocation4], 256
    $region41: #{tpu_custom_call.1} parent=1 // pred_fallthru
      _
    %1252 = vsyncpa [#allocation3], 1
    %1253 = vsyncpa [#allocation4], 1

</llo_original>
